<compile_context>
chip_gen: v7x
topology: tpu7x:2x2x1
jax: 0.10.0
libtpu: 0.0.40
codegen_flags: <defaults>
</compile_context>

<pallas_src>
import jax
import jax.numpy as jnp
from jax.experimental import pallas as pl
from jax.experimental.pallas import tpu as pltpu


_MAX_DMA_CHUNKS = 4  # started back-to-back, then drained


def _chunk_splits(rows: int, max_chunks: int):
    """Static row boundaries for up to `max_chunks` contiguous chunks."""
    n_chunks = max(1, min(max_chunks, rows))
    return tuple((rows * c) // n_chunks for c in range(n_chunks + 1))


def _make_dma_copy_kernel(row_splits):
    """Kernel: chunked HBM->HBM DMA copy of a 2-D (rows, cols) array.

    `row_splits` are static Python ints; chunk c covers rows
    [row_splits[c], row_splits[c+1]).  Rows are contiguous in HBM, so each
    chunk is a single contiguous copy.
    """
    n_chunks = len(row_splits) - 1

    def kernel(x_hbm, o_hbm, sems):
        copies = []
        for c in range(n_chunks):
            lo = row_splits[c]
            sz = row_splits[c + 1] - lo
            cp = pltpu.make_async_copy(
                x_hbm.at[pl.ds(lo, sz)],
                o_hbm.at[pl.ds(lo, sz)],
                sems.at[c],
            )
            cp.start()
            copies.append(cp)
        # All DMAs are now in flight; drain them.
        for cp in copies:
            cp.wait()

    return kernel


def flatten_reference(x: jax.Array) -> jax.Array:
    """The real op: metadata-only reshape (matches torch .view on contiguous)."""
    return jnp.reshape(x, (x.shape[0], -1))


@jax.jit
def flatten_pallas(x: jax.Array) -> jax.Array:
    """PyTorch Flatten: (N, d1, d2, ...) -> (N, d1*d2*...), via a Pallas kernel."""
    n = x.shape[0]
    f = 1
    for s in x.shape[1:]:
        f *= s

    # Metadata-only reshape; identical row-major semantics to torch .view on a
    # contiguous tensor.  The pallas_call below just materializes a copy.
    x2d = jnp.reshape(x, (n, f))

    splits = _chunk_splits(n, _MAX_DMA_CHUNKS)
    n_chunks = len(splits) - 1

    return pl.pallas_call(
        _make_dma_copy_kernel(splits),
        out_shape=jax.ShapeDtypeStruct((n, f), x.dtype),
        in_specs=[pl.BlockSpec(memory_space=pl.ANY)],   # raw HBM ref, no auto-DMA
        out_specs=pl.BlockSpec(memory_space=pl.ANY),    # raw HBM ref, no auto-DMA
        scratch_shapes=[pltpu.SemaphoreType.DMA((n_chunks,))],
    )(x2d)


if __name__ == "__main__":
    key = jax.random.PRNGKey(0)
    # Small NCHW input: batch=2, channels=4, spatial=16x16 -> (2, 1024)
    x = jax.random.normal(key, (2, 4, 16, 16), dtype=jnp.float32)

    out = flatten_pallas(x)
    out = jax.block_until_ready(out)

    # Reference check against plain JAX reshape (same semantics as torch .view)
    ref = flatten_reference(x)
    assert out.shape == (2, 4 * 16 * 16), out.shape
    assert out.dtype == x.dtype
    assert bool(jnp.array_equal(out, ref))

    print("KERNEL_OK")
</pallas_src>

<mosaic_0001>
module attributes {stable_mosaic.version = 11 : i64} {
  func.func @kernel(%arg0: memref<2x1024xf32, #tpu.memory_space<any>>, %arg1: memref<2x1024xf32, #tpu.memory_space<any>>, %arg2: memref<2x!tpu.dma_semaphore, #tpu.memory_space<semaphore_mem>>) attributes {dimension_semantics = [], scalar_prefetch = 0 : i64, scratch_operands = 1 : i64, tpu.core_type = #tpu.core_type<tc>} {
    %c0_i32 = arith.constant 0 : i32
    %c0_i32_0 = arith.constant 0 : i32
    %c0_i32_1 = arith.constant 0 : i32
    %0 = tpu.memref_slice %arg0[%c0_i32_0, %c0_i32_1] : memref<2x1024xf32, #tpu.memory_space<any>> -> memref<1x1024xf32, #tpu.memory_space<any>>
    %c0_i32_2 = arith.constant 0 : i32
    %c0_i32_3 = arith.constant 0 : i32
    %1 = tpu.memref_slice %arg1[%c0_i32_2, %c0_i32_3] : memref<2x1024xf32, #tpu.memory_space<any>> -> memref<1x1024xf32, #tpu.memory_space<any>>
    %2 = tpu.memref_slice %arg2[%c0_i32] : memref<2x!tpu.dma_semaphore, #tpu.memory_space<semaphore_mem>> -> memref<1x!tpu.dma_semaphore, #tpu.memory_space<semaphore_mem>>
    %3 = tpu.memref_squeeze %2 : memref<1x!tpu.dma_semaphore, #tpu.memory_space<semaphore_mem>> -> memref<!tpu.dma_semaphore, #tpu.memory_space<semaphore_mem>>
    tpu.enqueue_dma source(%0 : memref<1x1024xf32, #tpu.memory_space<any>>) target(%1 : memref<1x1024xf32, #tpu.memory_space<any>>) target_semaphore(%3 : memref<!tpu.dma_semaphore, #tpu.memory_space<semaphore_mem>>)
    %c1_i32 = arith.constant 1 : i32
    %c1_i32_4 = arith.constant 1 : i32
    %c0_i32_5 = arith.constant 0 : i32
    %4 = tpu.memref_slice %arg0[%c1_i32_4, %c0_i32_5] : memref<2x1024xf32, #tpu.memory_space<any>> -> memref<1x1024xf32, #tpu.memory_space<any>>
    %c1_i32_6 = arith.constant 1 : i32
    %c0_i32_7 = arith.constant 0 : i32
    %5 = tpu.memref_slice %arg1[%c1_i32_6, %c0_i32_7] : memref<2x1024xf32, #tpu.memory_space<any>> -> memref<1x1024xf32, #tpu.memory_space<any>>
    %6 = tpu.memref_slice %arg2[%c1_i32] : memref<2x!tpu.dma_semaphore, #tpu.memory_space<semaphore_mem>> -> memref<1x!tpu.dma_semaphore, #tpu.memory_space<semaphore_mem>>
    %7 = tpu.memref_squeeze %6 : memref<1x!tpu.dma_semaphore, #tpu.memory_space<semaphore_mem>> -> memref<!tpu.dma_semaphore, #tpu.memory_space<semaphore_mem>>
    tpu.enqueue_dma source(%4 : memref<1x1024xf32, #tpu.memory_space<any>>) target(%5 : memref<1x1024xf32, #tpu.memory_space<any>>) target_semaphore(%7 : memref<!tpu.dma_semaphore, #tpu.memory_space<semaphore_mem>>)
    %c0_i32_8 = arith.constant 0 : i32
    %c0_i32_9 = arith.constant 0 : i32
    %c0_i32_10 = arith.constant 0 : i32
    %8 = tpu.memref_slice %arg0[%c0_i32_9, %c0_i32_10] : memref<2x1024xf32, #tpu.memory_space<any>> -> memref<1x1024xf32, #tpu.memory_space<any>>
    %c0_i32_11 = arith.constant 0 : i32
    %c0_i32_12 = arith.constant 0 : i32
    %9 = tpu.memref_slice %arg1[%c0_i32_11, %c0_i32_12] : memref<2x1024xf32, #tpu.memory_space<any>> -> memref<1x1024xf32, #tpu.memory_space<any>>
    %10 = tpu.memref_slice %arg2[%c0_i32_8] : memref<2x!tpu.dma_semaphore, #tpu.memory_space<semaphore_mem>> -> memref<1x!tpu.dma_semaphore, #tpu.memory_space<semaphore_mem>>
    %11 = tpu.memref_squeeze %10 : memref<1x!tpu.dma_semaphore, #tpu.memory_space<semaphore_mem>> -> memref<!tpu.dma_semaphore, #tpu.memory_space<semaphore_mem>>
    tpu.wait_dma2 semaphore(%11 : memref<!tpu.dma_semaphore, #tpu.memory_space<semaphore_mem>>) src(%8 : memref<1x1024xf32, #tpu.memory_space<any>>) dst(%9 : memref<1x1024xf32, #tpu.memory_space<any>>)
    %c1_i32_13 = arith.constant 1 : i32
    %c1_i32_14 = arith.constant 1 : i32
    %c0_i32_15 = arith.constant 0 : i32
    %12 = tpu.memref_slice %arg0[%c1_i32_14, %c0_i32_15] : memref<2x1024xf32, #tpu.memory_space<any>> -> memref<1x1024xf32, #tpu.memory_space<any>>
    %c1_i32_16 = arith.constant 1 : i32
    %c0_i32_17 = arith.constant 0 : i32
    %13 = tpu.memref_slice %arg1[%c1_i32_16, %c0_i32_17] : memref<2x1024xf32, #tpu.memory_space<any>> -> memref<1x1024xf32, #tpu.memory_space<any>>
    %14 = tpu.memref_slice %arg2[%c1_i32_13] : memref<2x!tpu.dma_semaphore, #tpu.memory_space<semaphore_mem>> -> memref<1x!tpu.dma_semaphore, #tpu.memory_space<semaphore_mem>>
    %15 = tpu.memref_squeeze %14 : memref<1x!tpu.dma_semaphore, #tpu.memory_space<semaphore_mem>> -> memref<!tpu.dma_semaphore, #tpu.memory_space<semaphore_mem>>
    tpu.wait_dma2 semaphore(%15 : memref<!tpu.dma_semaphore, #tpu.memory_space<semaphore_mem>>) src(%12 : memref<1x1024xf32, #tpu.memory_space<any>>) dst(%13 : memref<1x1024xf32, #tpu.memory_space<any>>)
    return
  }
}

</mosaic_0001>

<llo_original>
// kernel: flatten_pallas.1
$region0: #{flatten_pallas.1}
  #allocation0 [shape = 'u32[]', space=smem, size = 0x4, offset = 0x4, fixed_abs, tag = 'smem constant byte address 0x4 - core index']
  #allocation1 [shape = 'u32[144,128]{1,0:T(1,128)}', space=vmem, size = 0x12000, scoped, tag = 'internal scratch']
  #allocation2 [shape = 's32[2]{0}', space=sflag, size = 0x8, scoped, tag = 'scratch operand']
  #allocation3 [shape = 's32[]', space=sflag, size = 0x4, offset = 0, fixed_abs, tag = 'sflag constant byte address 0x0 - dummy sync flag']
  #allocation4 [shape = 's32[]', space=sflag, size = 0x4, offset = 0, fixed_abs, tag = 'sflag constant byte address 0x0 - dummy sync flag']
  %s0 = inlined_call_operand.vmem [shape: f32[2,1024], index: 0, kind: input, shape index: {}]
  %s1 = inlined_call_operand.hbm [shape: f32[2,1024], index: 1, kind: output, shape index: {}]
  %s2 = sld [smem:[#allocation0]]
  $region2: #{flatten_pallas.1} parent=0
    _
  %s4 = ssub.s32 1, %s2
  %s5 = scalar_select 0, %s4, %s2
  %s7 = sshll.u32 %s0, 4
  %s8 = int_to_ptr.vmem [resolvable:$true] %s7
  %10 = dma.vmem_to_hbm [thread:$0]  %s8, 128, %s1, [#allocation2], 32, 32, 1
  %s11 = scalar_lea.vmem %s0, 1
  %s12 = scalar_lea.hbm %s1, 16
  %s13 = scalar_lea.sflag [#allocation2], 1
  %s15 = sshll.u32 %s11, 4
  %s16 = int_to_ptr.vmem [resolvable:$true] %s15
  %18 = dma.vmem_to_hbm [thread:$0]  %s16, 128, %s12, %s13, 32, 32, 1
  %s19 = smul.u32 1, 8
  %s20 = sshll.u32 %s19, 4
  %21 = dma.done [#allocation2], %s20
  %s22 = sshll.u32 %s19, 4
  %23 = dma.done %s13, %s22
  %24 = vsyncmov [#allocation2]
  %s25 = vpop.sfrf %24
  %p26 = scmp.eq.s32.totalorder %s25, 0
  %p27 = pneg %p26
  %29 = shalt.err (%p27)
  %s30 = scalar_lea.sflag [#allocation2], 1
  %31 = vsyncmov %s30
  %s32 = vpop.sfrf %31
  %p33 = scmp.eq.s32.totalorder %s32, 0
  %p34 = pneg %p33
  %36 = shalt.err (%p34)

</llo_original>
